<compile_context>
chip_gen: v7x
topology: tpu7x:2x2x1
jax: 0.10.0
libtpu: 0.0.40
codegen_flags: <defaults>
</compile_context>

<pallas_src>
import functools

import jax
import jax.numpy as jnp
from jax.experimental import pallas as pl
from jax.experimental.pallas import tpu as pltpu

EPS = 1e-5                            # torch.nn.BatchNorm2d default
MAX_TILE_LANES = 2048                 # pixel-axis tile cap (multiple of 128)
VMEM_LIMIT_BYTES = 32 * 1024 * 1024   # explicit scoped-VMEM budget: >= v5e's 16 MiB
                                      # default, well under v7x's 64 MiB physical


def _pick_tile(hw):
    """Largest pixel-axis tile dividing HW: full HW if small, else a
    multiple-of-128 divisor <= MAX_TILE_LANES (falls back to HW)."""
    if hw <= MAX_TILE_LANES:
        return hw
    for t in range(MAX_TILE_LANES, 127, -128):
        if hw % t == 0:
            return t
    # TODO(synk): masked remainder tiles for HW with no multiple-of-128 divisor.
    return hw


def _pass1_kernel(N, HW, Cin, eps,
                  x_ref, w1_ref, b1_ref, w2_ref, b2_ref,
                  relu_ref, m1_ref, istd_ref, pool_ref, out_ref,
                  psum_ref, pssq_ref):
    """conv1+relu per HW tile, accumulate BN1 stats; head (stats/pool/conv2/bn2)
    on the final grid step."""
    t = pl.program_id(0)

    @pl.when(t == 0)
    def _init():
        psum_ref[...] = jnp.zeros_like(psum_ref)
        pssq_ref[...] = jnp.zeros_like(pssq_ref)

    x = x_ref[...]                                            # (N, Cin, T) f32
    sums, sqs = [], []
    for o in range(Cin):
        # conv1 (1x1): Cin scalar-broadcast VPU FMAs per output channel.
        acc = x[:, 0:1, :] * w1_ref[o * Cin + 0]
        for k in range(1, Cin):
            acc = acc + x[:, k:k + 1, :] * w1_ref[o * Cin + k]
        r = jnp.maximum(acc + b1_ref[o], 0.0)                 # (N, 1, T)
        relu_ref[:, o:o + 1, :] = r                           # write tile slice directly
        sums.append(jnp.sum(r, axis=-1))                      # (N, 1) per-sample sum
        sqs.append(jnp.sum(r * r, axis=-1))                   # (N, 1)
    psum_ref[...] += jnp.concatenate(sums, axis=1)            # (N, Cin) — tiny
    pssq_ref[...] += jnp.concatenate(sqs, axis=1)

    @pl.when(t == pl.num_programs(0) - 1)
    def _head():
        inv_cnt = 1.0 / float(N * HW)
        ps = psum_ref[...]                                    # (N, Cin)
        ss = pssq_ref[...]                                    # (N, Cin)
        # BN1 batch stats (training mode, biased variance), clamped for safety.
        m1 = jnp.sum(ps, axis=0, keepdims=True) * inv_cnt     # (1, Cin)
        ex2 = jnp.sum(ss, axis=0, keepdims=True) * inv_cnt
        v1 = jnp.maximum(ex2 - m1 * m1, 0.0)
        istd1 = jax.lax.rsqrt(v1 + eps)
        m1_ref[...] = m1
        istd_ref[...] = istd1
        # AdaptiveAvgPool2d(1) of bn1, analytically from per-sample relu sums
        # (bn1 tiles are never re-read here).
        pool = (ps * (1.0 / float(HW)) - m1) * istd1          # (N, Cin)
        pool_ref[...] = pool
        # conv2 (1x1, Cin -> 1) + ReLU: Cin scalar FMAs on the VPU.
        y = pool[:, 0:1] * w2_ref[0]
        for k in range(1, Cin):
            y = y + pool[:, k:k + 1] * w2_ref[k]
        x2 = jnp.maximum(y + b2_ref[0], 0.0)                  # (N, 1)
        # BN2 (training mode) over the batch.
        m2 = jnp.mean(x2, axis=0, keepdims=True)
        v2 = jnp.maximum(jnp.mean(x2 * x2, axis=0, keepdims=True) - m2 * m2, 0.0)
        out_ref[...] = (x2 - m2) * jax.lax.rsqrt(v2 + eps)


def _pass2_kernel(Cin, relu_ref, m1_ref, istd_ref, bn1_ref):
    """Apply BN1 (scale/shift per channel) to relu tiles. Fully parallel."""
    r = relu_ref[...]                                         # (N, Cin, T)
    for o in range(Cin):
        bn1_ref[:, o:o + 1, :] = (r[:, o:o + 1, :] - m1_ref[0, o]) * istd_ref[0, o]


def linear_test_model(x_nchw, w1, b1, w2, b2):
    """x_nchw: (N, 3, H, W); w1: (3,3,1,1); b1: (3,); w2: (1,3,1,1); b2: (1,)."""
    N, Cin, H, W = x_nchw.shape
    HW = H * W
    Cout2 = w2.shape[0]
    T = _pick_tile(HW)
    assert HW % T == 0
    num_tiles = HW // T

    # Layout plumbing only: free reshapes, no transposes, no padded buffers.
    x3 = x_nchw.reshape(N, Cin, HW).astype(jnp.float32)           # (N, Cin, HW)
    w1f = w1[:, :, 0, 0].reshape(-1).astype(jnp.float32)          # (Cin*Cin,), [out, in]
    b1f = b1.astype(jnp.float32)                                  # (Cin,)
    w2f = w2[:, :, 0, 0].reshape(-1).astype(jnp.float32)          # (Cin,)
    b2f = b2.astype(jnp.float32)                                  # (1,)

    # ---- pass 1: conv1 + relu + BN1 stats accumulation + tiny head ----------
    relu3, m1, istd1, pool2, out2 = pl.pallas_call(
        functools.partial(_pass1_kernel, N, HW, Cin, EPS),
        grid=(num_tiles,),
        in_specs=[
            pl.BlockSpec((N, Cin, T), lambda t: (0, 0, t)),                 # x tile
            pl.BlockSpec(memory_space=pltpu.MemorySpace.SMEM),              # w1
            pl.BlockSpec(memory_space=pltpu.MemorySpace.SMEM),              # b1
            pl.BlockSpec(memory_space=pltpu.MemorySpace.SMEM),              # w2
            pl.BlockSpec(memory_space=pltpu.MemorySpace.SMEM),              # b2
        ],
        out_shape=(
            jax.ShapeDtypeStruct((N, Cin, HW), jnp.float32),   # relu
            jax.ShapeDtypeStruct((1, Cin), jnp.float32),       # bn1 mean
            jax.ShapeDtypeStruct((1, Cin), jnp.float32),       # bn1 inv-std
            jax.ShapeDtypeStruct((N, Cin), jnp.float32),       # avg_pool
            jax.ShapeDtypeStruct((N, Cout2), jnp.float32),     # final out (bn2)
        ),
        out_specs=(
            pl.BlockSpec((N, Cin, T), lambda t: (0, 0, t)),
            pl.BlockSpec((1, Cin), lambda t: (0, 0)),
            pl.BlockSpec((1, Cin), lambda t: (0, 0)),
            pl.BlockSpec((N, Cin), lambda t: (0, 0)),
            pl.BlockSpec((N, Cout2), lambda t: (0, 0)),
        ),
        scratch_shapes=[pltpu.VMEM((N, Cin), jnp.float32),     # per-(n,c) sum of relu
                        pltpu.VMEM((N, Cin), jnp.float32)],    # per-(n,c) sum of relu^2
        compiler_params=pltpu.CompilerParams(
            dimension_semantics=("arbitrary",),                # cross-step accumulation
            vmem_limit_bytes=VMEM_LIMIT_BYTES),
    )(x3, w1f, b1f, w2f, b2f)

    # ---- pass 2: apply BN1 to relu tiles (independent tiles -> "parallel") --
    bn13 = pl.pallas_call(
        functools.partial(_pass2_kernel, Cin),
        grid=(num_tiles,),
        in_specs=[
            pl.BlockSpec((N, Cin, T), lambda t: (0, 0, t)),                 # relu tile
            pl.BlockSpec(memory_space=pltpu.MemorySpace.SMEM),              # m1
            pl.BlockSpec(memory_space=pltpu.MemorySpace.SMEM),              # inv-std
        ],
        out_shape=jax.ShapeDtypeStruct((N, Cin, HW), jnp.float32),
        out_specs=pl.BlockSpec((N, Cin, T), lambda t: (0, 0, t)),
        compiler_params=pltpu.CompilerParams(
            dimension_semantics=("parallel",),                 # both TCs on v7x
            vmem_limit_bytes=VMEM_LIMIT_BYTES),
    )(relu3, m1, istd1)

    # Restore PyTorch NCHW shapes (free reshapes, no transposes).
    relu = relu3.reshape(N, Cin, H, W)
    bn1 = bn13.reshape(N, Cin, H, W)
    avg_pool = pool2.reshape(N, Cin, 1, 1)
    out = out2.reshape(N, Cout2, 1, 1)
    return out, relu, bn1, avg_pool


def reference(x, w1, b1, w2, b2):
    """Plain-JAX reference of the PyTorch forward (training-mode BN)."""
    def conv1x1(x, w, b):
        return jnp.einsum('nchw,oc->nohw', x, w[:, :, 0, 0]) + b[None, :, None, None]

    def bn_train(x):
        m = jnp.mean(x, axis=(0, 2, 3), keepdims=True)
        v = jnp.mean((x - m) ** 2, axis=(0, 2, 3), keepdims=True)
        return (x - m) / jnp.sqrt(v + EPS)

    relu = jnp.maximum(conv1x1(x, w1, b1), 0.0)
    bn1 = bn_train(relu)
    pool = jnp.mean(bn1, axis=(2, 3), keepdims=True)
    x2 = jnp.maximum(conv1x1(pool, w2, b2), 0.0)
    out = bn_train(x2)
    return out, relu, bn1, pool


if __name__ == "__main__":
    key = jax.random.PRNGKey(0)
    kx, kw1, kb1, kw2, kb2 = jax.random.split(key, 5)

    N, C, H, W = 2, 3, 16, 16
    x = jax.random.normal(kx, (N, C, H, W), jnp.float32)

    # Deterministic params mirroring the module: weight = rand - 0.5,
    # bias ~ U(-1/sqrt(fan_in), 1/sqrt(fan_in)) (PyTorch Conv2d default).
    w1 = jax.random.uniform(kw1, (3, 3, 1, 1), jnp.float32, -0.5, 0.5)
    b1 = jax.random.uniform(kb1, (3,), jnp.float32, -1.0 / 3 ** 0.5, 1.0 / 3 ** 0.5)
    w2 = jax.random.uniform(kw2, (1, 3, 1, 1), jnp.float32, -0.5, 0.5)
    b2 = jax.random.uniform(kb2, (1,), jnp.float32, -1.0 / 3 ** 0.5, 1.0 / 3 ** 0.5)

    outs = linear_test_model(x, w1, b1, w2, b2)
    outs = jax.block_until_ready(outs)

    refs = reference(x, w1, b1, w2, b2)
    names = ("out", "relu", "bn1", "avg_pool")
    for name, got, want in zip(names, outs, refs):
        assert got.shape == want.shape, (name, got.shape, want.shape)
        assert jnp.allclose(got, want, atol=1e-4, rtol=1e-4), name

    print("KERNEL_OK")
</pallas_src>

<mosaic_0001>
module attributes {stable_mosaic.version = 11 : i64} {
  func.func @_pass1_kernel(%arg0: i32, %arg1: memref<2x3x256xf32, #tpu.memory_space<vmem>>, %arg2: memref<9xf32, #tpu.memory_space<smem>>, %arg3: memref<3xf32, #tpu.memory_space<smem>>, %arg4: memref<3xf32, #tpu.memory_space<smem>>, %arg5: memref<1xf32, #tpu.memory_space<smem>>, %arg6: memref<2x3x256xf32, #tpu.memory_space<vmem>>, %arg7: memref<1x3xf32, #tpu.memory_space<vmem>>, %arg8: memref<1x3xf32, #tpu.memory_space<vmem>>, %arg9: memref<2x3xf32, #tpu.memory_space<vmem>>, %arg10: memref<2x1xf32, #tpu.memory_space<vmem>>, %arg11: memref<2x3xf32, #tpu.memory_space<vmem>>, %arg12: memref<2x3xf32, #tpu.memory_space<vmem>>) attributes {dimension_semantics = [#tpu.dimension_semantics<arbitrary>], iteration_bounds = array<i64: 1>, scalar_prefetch = 0 : i64, scratch_operands = 2 : i64, tpu.core_type = #tpu.core_type<tc>, window_params = [{transform_indices = @transform_0, window_bounds = array<i64: 2, 3, 256>}, {transform_indices = @transform_1, window_bounds = array<i64: 9>}, {transform_indices = @transform_2, window_bounds = array<i64: 3>}, {transform_indices = @transform_3, window_bounds = array<i64: 3>}, {transform_indices = @transform_4, window_bounds = array<i64: 1>}, {transform_indices = @transform_5, window_bounds = array<i64: 2, 3, 256>}, {pipeline_mode = #tpu.pipeline_mode<synchronous>, transform_indices = @transform_6, window_bounds = array<i64: 1, 3>}, {pipeline_mode = #tpu.pipeline_mode<synchronous>, transform_indices = @transform_7, window_bounds = array<i64: 1, 3>}, {pipeline_mode = #tpu.pipeline_mode<synchronous>, transform_indices = @transform_8, window_bounds = array<i64: 2, 3>}, {pipeline_mode = #tpu.pipeline_mode<synchronous>, transform_indices = @transform_9, window_bounds = array<i64: 2, 1>}]} {
    %c0_i32 = arith.constant 0 : i32
    %0 = arith.cmpi eq, %arg0, %c0_i32 : i32
    %1 = arith.extui %0 : i1 to i32
    %c0_i32_0 = arith.constant 0 : i32
    %2 = arith.cmpi ne, %1, %c0_i32_0 : i32
    scf.if %2 {
      %cst_34 = arith.constant 0.000000e+00 : f32
      %84 = vector.broadcast %cst_34 : f32 to vector<2x3xf32>
      %c0_35 = arith.constant 0 : index
      %c0_36 = arith.constant 0 : index
      %85 = vector.load %arg11[%c0_35, %c0_36] : memref<2x3xf32, #tpu.memory_space<vmem>>, vector<2x3xf32>
      tpu.vector_store %arg11[%c0_35, %c0_36], %84 {strides = array<i32>} : memref<2x3xf32, #tpu.memory_space<vmem>>, vector<2x3xf32>,
      %cst_37 = arith.constant 0.000000e+00 : f32
      %86 = vector.broadcast %cst_37 : f32 to vector<2x3xf32>
      %c0_38 = arith.constant 0 : index
      %c0_39 = arith.constant 0 : index
      %87 = vector.load %arg12[%c0_38, %c0_39] : memref<2x3xf32, #tpu.memory_space<vmem>>, vector<2x3xf32>
      tpu.vector_store %arg12[%c0_38, %c0_39], %86 {strides = array<i32>} : memref<2x3xf32, #tpu.memory_space<vmem>>, vector<2x3xf32>,
    } else {
    }
    %c0 = arith.constant 0 : index
    %c0_1 = arith.constant 0 : index
    %c0_2 = arith.constant 0 : index
    %3 = vector.load %arg1[%c0, %c0_1, %c0_2] : memref<2x3x256xf32, #tpu.memory_space<vmem>>, vector<2x3x256xf32>
    %4 = vector.extract_strided_slice %3 {offsets = [0, 0, 0], sizes = [2, 1, 256], strides = [1, 1, 1]} : vector<2x3x256xf32> to vector<2x1x256xf32>
    %c0_3 = arith.constant 0 : index
    %5 = memref.load %arg2[%c0_3] : memref<9xf32, #tpu.memory_space<smem>>
    %6 = vector.broadcast %5 : f32 to vector<2x1x256xf32>
    %7 = arith.mulf %4, %6 : vector<2x1x256xf32>
    %8 = vector.extract_strided_slice %3 {offsets = [0, 1, 0], sizes = [2, 1, 256], strides = [1, 1, 1]} : vector<2x3x256xf32> to vector<2x1x256xf32>
    %c1 = arith.constant 1 : index
    %9 = memref.load %arg2[%c1] : memref<9xf32, #tpu.memory_space<smem>>
    %10 = vector.broadcast %9 : f32 to vector<2x1x256xf32>
    %11 = arith.mulf %8, %10 : vector<2x1x256xf32>
    %12 = arith.addf %7, %11 : vector<2x1x256xf32>
    %13 = vector.extract_strided_slice %3 {offsets = [0, 2, 0], sizes = [2, 1, 256], strides = [1, 1, 1]} : vector<2x3x256xf32> to vector<2x1x256xf32>
    %c2 = arith.constant 2 : index
    %14 = memref.load %arg2[%c2] : memref<9xf32, #tpu.memory_space<smem>>
    %15 = vector.broadcast %14 : f32 to vector<2x1x256xf32>
    %16 = arith.mulf %13, %15 : vector<2x1x256xf32>
    %17 = arith.addf %12, %16 : vector<2x1x256xf32>
    %c0_4 = arith.constant 0 : index
    %18 = memref.load %arg3[%c0_4] : memref<3xf32, #tpu.memory_space<smem>>
    %19 = vector.broadcast %18 : f32 to vector<2x1x256xf32>
    %20 = arith.addf %17, %19 : vector<2x1x256xf32>
    %cst = arith.constant 0.000000e+00 : f32
    %21 = vector.broadcast %cst : f32 to vector<2x1x256xf32>
    %22 = arith.maximumf %20, %21 : vector<2x1x256xf32>
    %c0_5 = arith.constant 0 : index
    %c0_6 = arith.constant 0 : index
    %c0_7 = arith.constant 0 : index
    %23 = vector.load %arg6[%c0_5, %c0_6, %c0_7] : memref<2x3x256xf32, #tpu.memory_space<vmem>>, vector<2x1x256xf32>
    tpu.vector_store %arg6[%c0_5, %c0_6, %c0_7], %22 {strides = array<i32>} : memref<2x3x256xf32, #tpu.memory_space<vmem>>, vector<2x1x256xf32>,
    %cst_8 = arith.constant dense<0.000000e+00> : vector<2x1xf32>
    %24 = vector.multi_reduction <add>, %22, %cst_8 [2] : vector<2x1x256xf32> to vector<2x1xf32>
    %25 = arith.mulf %22, %22 : vector<2x1x256xf32>
    %cst_9 = arith.constant dense<0.000000e+00> : vector<2x1xf32>
    %26 = vector.multi_reduction <add>, %25, %cst_9 [2] : vector<2x1x256xf32> to vector<2x1xf32>
    %27 = vector.extract_strided_slice %3 {offsets = [0, 0, 0], sizes = [2, 1, 256], strides = [1, 1, 1]} : vector<2x3x256xf32> to vector<2x1x256xf32>
    %c3 = arith.constant 3 : index
    %28 = memref.load %arg2[%c3] : memref<9xf32, #tpu.memory_space<smem>>
    %29 = vector.broadcast %28 : f32 to vector<2x1x256xf32>
    %30 = arith.mulf %27, %29 : vector<2x1x256xf32>
    %31 = vector.extract_strided_slice %3 {offsets = [0, 1, 0], sizes = [2, 1, 256], strides = [1, 1, 1]} : vector<2x3x256xf32> to vector<2x1x256xf32>
    %c4 = arith.constant 4 : index
    %32 = memref.load %arg2[%c4] : memref<9xf32, #tpu.memory_space<smem>>
    %33 = vector.broadcast %32 : f32 to vector<2x1x256xf32>
    %34 = arith.mulf %31, %33 : vector<2x1x256xf32>
    %35 = arith.addf %30, %34 : vector<2x1x256xf32>
    %36 = vector.extract_strided_slice %3 {offsets = [0, 2, 0], sizes = [2, 1, 256], strides = [1, 1, 1]} : vector<2x3x256xf32> to vector<2x1x256xf32>
    %c5 = arith.constant 5 : index
    %37 = memref.load %arg2[%c5] : memref<9xf32, #tpu.memory_space<smem>>
    %38 = vector.broadcast %37 : f32 to vector<2x1x256xf32>
    %39 = arith.mulf %36, %38 : vector<2x1x256xf32>
    %40 = arith.addf %35, %39 : vector<2x1x256xf32>
    %c1_10 = arith.constant 1 : index
    %41 = memref.load %arg3[%c1_10] : memref<3xf32, #tpu.memory_space<smem>>
    %42 = vector.broadcast %41 : f32 to vector<2x1x256xf32>
    %43 = arith.addf %40, %42 : vector<2x1x256xf32>
    %cst_11 = arith.constant 0.000000e+00 : f32
    %44 = vector.broadcast %cst_11 : f32 to vector<2x1x256xf32>
    %45 = arith.maximumf %43, %44 : vector<2x1x256xf32>
    %c0_12 = arith.constant 0 : index
    %c1_13 = arith.constant 1 : index
    %c0_14 = arith.constant 0 : index
    %46 = vector.load %arg6[%c0_12, %c1_13, %c0_14] : memref<2x3x256xf32, #tpu.memory_space<vmem>>, vector<2x1x256xf32>
    tpu.vector_store %arg6[%c0_12, %c1_13, %c0_14], %45 {strides = array<i32>} : memref<2x3x256xf32, #tpu.memory_space<vmem>>, vector<2x1x256xf32>,
    %cst_15 = arith.constant dense<0.000000e+00> : vector<2x1xf32>
    %47 = vector.multi_reduction <add>, %45, %cst_15 [2] : vector<2x1x256xf32> to vector<2x1xf32>
    %48 = arith.mulf %45, %45 : vector<2x1x256xf32>
    %cst_16 = arith.constant dense<0.000000e+00> : vector<2x1xf32>
    %49 = vector.multi_reduction <add>, %48, %cst_16 [2] : vector<2x1x256xf32> to vector<2x1xf32>
    %50 = vector.extract_strided_slice %3 {offsets = [0, 0, 0], sizes = [2, 1, 256], strides = [1, 1, 1]} : vector<2x3x256xf32> to vector<2x1x256xf32>
    %c6 = arith.constant 6 : index
    %51 = memref.load %arg2[%c6] : memref<9xf32, #tpu.memory_space<smem>>
    %52 = vector.broadcast %51 : f32 to vector<2x1x256xf32>
    %53 = arith.mulf %50, %52 : vector<2x1x256xf32>
    %54 = vector.extract_strided_slice %3 {offsets = [0, 1, 0], sizes = [2, 1, 256], strides = [1, 1, 1]} : vector<2x3x256xf32> to vector<2x1x256xf32>
    %c7 = arith.constant 7 : index
    %55 = memref.load %arg2[%c7] : memref<9xf32, #tpu.memory_space<smem>>
    %56 = vector.broadcast %55 : f32 to vector<2x1x256xf32>
    %57 = arith.mulf %54, %56 : vector<2x1x256xf32>
    %58 = arith.addf %53, %57 : vector<2x1x256xf32>
    %59 = vector.extract_strided_slice %3 {offsets = [0, 2, 0], sizes = [2, 1, 256], strides = [1, 1, 1]} : vector<2x3x256xf32> to vector<2x1x256xf32>
    %c8 = arith.constant 8 : index
    %60 = memref.load %arg2[%c8] : memref<9xf32, #tpu.memory_space<smem>>
    %61 = vector.broadcast %60 : f32 to vector<2x1x256xf32>
    %62 = arith.mulf %59, %61 : vector<2x1x256xf32>
    %63 = arith.addf %58, %62 : vector<2x1x256xf32>
    %c2_17 = arith.constant 2 : index
    %64 = memref.load %arg3[%c2_17] : memref<3xf32, #tpu.memory_space<smem>>
    %65 = vector.broadcast %64 : f32 to vector<2x1x256xf32>
    %66 = arith.addf %63, %65 : vector<2x1x256xf32>
    %cst_18 = arith.constant 0.000000e+00 : f32
    %67 = vector.broadcast %cst_18 : f32 to vector<2x1x256xf32>
    %68 = arith.maximumf %66, %67 : vector<2x1x256xf32>
    %c0_19 = arith.constant 0 : index
    %c2_20 = arith.constant 2 : index
    %c0_21 = arith.constant 0 : index
    %69 = vector.load %arg6[%c0_19, %c2_20, %c0_21] : memref<2x3x256xf32, #tpu.memory_space<vmem>>, vector<2x1x256xf32>
    tpu.vector_store %arg6[%c0_19, %c2_20, %c0_21], %68 {strides = array<i32>} : memref<2x3x256xf32, #tpu.memory_space<vmem>>, vector<2x1x256xf32>,
    %cst_22 = arith.constant dense<0.000000e+00> : vector<2x1xf32>
    %70 = vector.multi_reduction <add>, %68, %cst_22 [2] : vector<2x1x256xf32> to vector<2x1xf32>
    %71 = arith.mulf %68, %68 : vector<2x1x256xf32>
    %cst_23 = arith.constant dense<0.000000e+00> : vector<2x1xf32>
    %72 = vector.multi_reduction <add>, %71, %cst_23 [2] : vector<2x1x256xf32> to vector<2x1xf32>
    %c0_24 = arith.constant 0 : index
    %c0_25 = arith.constant 0 : index
    %73 = vector.load %arg11[%c0_24, %c0_25] : memref<2x3xf32, #tpu.memory_space<vmem>>, vector<2x3xf32>
    %74 = tpu.concatenate %24, %47, %70 in 1 : vector<2x1xf32>, vector<2x1xf32>, vector<2x1xf32> -> vector<2x3xf32>
    %75 = arith.addf %73, %74 : vector<2x3xf32>
    %c0_26 = arith.constant 0 : index
    %c0_27 = arith.constant 0 : index
    %76 = vector.load %arg11[%c0_26, %c0_27] : memref<2x3xf32, #tpu.memory_space<vmem>>, vector<2x3xf32>
    tpu.vector_store %arg11[%c0_26, %c0_27], %75 {strides = array<i32>} : memref<2x3xf32, #tpu.memory_space<vmem>>, vector<2x3xf32>,
    %c0_28 = arith.constant 0 : index
    %c0_29 = arith.constant 0 : index
    %77 = vector.load %arg12[%c0_28, %c0_29] : memref<2x3xf32, #tpu.memory_space<vmem>>, vector<2x3xf32>
    %78 = tpu.concatenate %26, %49, %72 in 1 : vector<2x1xf32>, vector<2x1xf32>, vector<2x1xf32> -> vector<2x3xf32>
    %79 = arith.addf %77, %78 : vector<2x3xf32>
    %c0_30 = arith.constant 0 : index
    %c0_31 = arith.constant 0 : index
    %80 = vector.load %arg12[%c0_30, %c0_31] : memref<2x3xf32, #tpu.memory_space<vmem>>, vector<2x3xf32>
    tpu.vector_store %arg12[%c0_30, %c0_31], %79 {strides = array<i32>} : memref<2x3xf32, #tpu.memory_space<vmem>>, vector<2x3xf32>,
    %c0_i32_32 = arith.constant 0 : i32
    %81 = arith.cmpi eq, %arg0, %c0_i32_32 : i32
    %82 = arith.extui %81 : i1 to i32
    %c0_i32_33 = arith.constant 0 : i32
    %83 = arith.cmpi ne, %82, %c0_i32_33 : i32
    scf.if %83 {
      %c0_34 = arith.constant 0 : index
      %c0_35 = arith.constant 0 : index
      %84 = vector.load %arg11[%c0_34, %c0_35] : memref<2x3xf32, #tpu.memory_space<vmem>>, vector<2x3xf32>
      %c0_36 = arith.constant 0 : index
      %c0_37 = arith.constant 0 : index
      %85 = vector.load %arg12[%c0_36, %c0_37] : memref<2x3xf32, #tpu.memory_space<vmem>>, vector<2x3xf32>
      %cst_38 = arith.constant dense<0.000000e+00> : vector<3xf32>
      %86 = vector.multi_reduction <add>, %84, %cst_38 [0] : vector<2x3xf32> to vector<3xf32>
      %87 = vector.shape_cast %86 : vector<3xf32> to vector<1x3xf32>
      %cst_39 = arith.constant 0.001953125 : f32
      %88 = vector.broadcast %cst_39 : f32 to vector<1x3xf32>
      %89 = arith.mulf %87, %88 : vector<1x3xf32>
      %cst_40 = arith.constant dense<0.000000e+00> : vector<3xf32>
      %90 = vector.multi_reduction <add>, %85, %cst_40 [0] : vector<2x3xf32> to vector<3xf32>
      %91 = vector.shape_cast %90 : vector<3xf32> to vector<1x3xf32>
      %cst_41 = arith.constant 0.001953125 : f32
      %92 = vector.broadcast %cst_41 : f32 to vector<1x3xf32>
      %93 = arith.mulf %91, %92 : vector<1x3xf32>
      %94 = arith.mulf %89, %89 : vector<1x3xf32>
      %95 = arith.subf %93, %94 : vector<1x3xf32>
      %cst_42 = arith.constant 0.000000e+00 : f32
      %96 = vector.broadcast %cst_42 : f32 to vector<1x3xf32>
      %97 = arith.maximumf %95, %96 : vector<1x3xf32>
      %cst_43 = arith.constant 9.99999974E-6 : f32
      %98 = vector.broadcast %cst_43 : f32 to vector<1x3xf32>
      %99 = arith.addf %97, %98 : vector<1x3xf32>
      %100 = math.rsqrt %99 : vector<1x3xf32>
      %c0_44 = arith.constant 0 : index
      %c0_45 = arith.constant 0 : index
      %101 = vector.load %arg7[%c0_44, %c0_45] : memref<1x3xf32, #tpu.memory_space<vmem>>, vector<1x3xf32>
      tpu.vector_store %arg7[%c0_44, %c0_45], %89 {strides = array<i32>} : memref<1x3xf32, #tpu.memory_space<vmem>>, vector<1x3xf32>,
      %c0_46 = arith.constant 0 : index
      %c0_47 = arith.constant 0 : index
      %102 = vector.load %arg8[%c0_46, %c0_47] : memref<1x3xf32, #tpu.memory_space<vmem>>, vector<1x3xf32>
      tpu.vector_store %arg8[%c0_46, %c0_47], %100 {strides = array<i32>} : memref<1x3xf32, #tpu.memory_space<vmem>>, vector<1x3xf32>,
      %cst_48 = arith.constant 3.906250e-03 : f32
      %103 = vector.broadcast %cst_48 : f32 to vector<2x3xf32>
      %104 = arith.mulf %84, %103 : vector<2x3xf32>
      %105 = vector.broadcast %89 : vector<1x3xf32> to vector<2x3xf32>
      %106 = arith.subf %104, %105 : vector<2x3xf32>
      %107 = vector.broadcast %100 : vector<1x3xf32> to vector<2x3xf32>
      %108 = arith.mulf %106, %107 : vector<2x3xf32>
      %c0_49 = arith.constant 0 : index
      %c0_50 = arith.constant 0 : index
      %109 = vector.load %arg9[%c0_49, %c0_50] : memref<2x3xf32, #tpu.memory_space<vmem>>, vector<2x3xf32>
      tpu.vector_store %arg9[%c0_49, %c0_50], %108 {strides = array<i32>} : memref<2x3xf32, #tpu.memory_space<vmem>>, vector<2x3xf32>,
      %110 = vector.extract_strided_slice %108 {offsets = [0, 0], sizes = [2, 1], strides = [1, 1]} : vector<2x3xf32> to vector<2x1xf32>
      %c0_51 = arith.constant 0 : index
      %111 = memref.load %arg4[%c0_51] : memref<3xf32, #tpu.memory_space<smem>>
      %112 = vector.broadcast %111 : f32 to vector<2x1xf32>
      %113 = arith.mulf %110, %112 : vector<2x1xf32>
      %114 = vector.extract_strided_slice %108 {offsets = [0, 1], sizes = [2, 1], strides = [1, 1]} : vector<2x3xf32> to vector<2x1xf32>
      %c1_52 = arith.constant 1 : index
      %115 = memref.load %arg4[%c1_52] : memref<3xf32, #tpu.memory_space<smem>>
      %116 = vector.broadcast %115 : f32 to vector<2x1xf32>
      %117 = arith.mulf %114, %116 : vector<2x1xf32>
      %118 = arith.addf %113, %117 : vector<2x1xf32>
      %119 = vector.extract_strided_slice %108 {offsets = [0, 2], sizes = [2, 1], strides = [1, 1]} : vector<2x3xf32> to vector<2x1xf32>
      %c2_53 = arith.constant 2 : index
      %120 = memref.load %arg4[%c2_53] : memref<3xf32, #tpu.memory_space<smem>>
      %121 = vector.broadcast %120 : f32 to vector<2x1xf32>
      %122 = arith.mulf %119, %121 : vector<2x1xf32>
      %123 = arith.addf %118, %122 : vector<2x1xf32>
      %c0_54 = arith.constant 0 : index
      %124 = memref.load %arg5[%c0_54] : memref<1xf32, #tpu.memory_space<smem>>
      %125 = vector.broadcast %124 : f32 to vector<2x1xf32>
      %126 = arith.addf %123, %125 : vector<2x1xf32>
      %cst_55 = arith.constant 0.000000e+00 : f32
      %127 = vector.broadcast %cst_55 : f32 to vector<2x1xf32>
      %128 = arith.maximumf %126, %127 : vector<2x1xf32>
      %cst_56 = arith.constant dense<0.000000e+00> : vector<1xf32>
      %129 = vector.multi_reduction <add>, %128, %cst_56 [0] : vector<2x1xf32> to vector<1xf32>
      %130 = vector.shape_cast %129 : vector<1xf32> to vector<1x1xf32>
      %cst_57 = arith.constant 2.000000e+00 : f32
      %131 = vector.broadcast %cst_57 : f32 to vector<1x1xf32>
      %132 = arith.divf %130, %131 : vector<1x1xf32>
      %133 = arith.mulf %128, %128 : vector<2x1xf32>
      %cst_58 = arith.constant dense<0.000000e+00> : vector<1xf32>
      %134 = vector.multi_reduction <add>, %133, %cst_58 [0] : vector<2x1xf32> to vector<1xf32>
      %135 = vector.shape_cast %134 : vector<1xf32> to vector<1x1xf32>
      %cst_59 = arith.constant 2.000000e+00 : f32
      %136 = vector.broadcast %cst_59 : f32 to vector<1x1xf32>
      %137 = arith.divf %135, %136 : vector<1x1xf32>
      %138 = arith.mulf %132, %132 : vector<1x1xf32>
      %139 = arith.subf %137, %138 : vector<1x1xf32>
      %cst_60 = arith.constant 0.000000e+00 : f32
      %140 = vector.broadcast %cst_60 : f32 to vector<1x1xf32>
      %141 = arith.maximumf %139, %140 : vector<1x1xf32>
      %142 = vector.broadcast %132 : vector<1x1xf32> to vector<2x1xf32>
      %143 = arith.subf %128, %142 : vector<2x1xf32>
      %cst_61 = arith.constant 9.99999974E-6 : f32
      %144 = vector.broadcast %cst_61 : f32 to vector<1x1xf32>
      %145 = arith.addf %141, %144 : vector<1x1xf32>
      %146 = math.rsqrt %145 : vector<1x1xf32>
      %147 = vector.broadcast %146 : vector<1x1xf32> to vector<2x1xf32>
      %148 = arith.mulf %143, %147 : vector<2x1xf32>
      %c0_62 = arith.constant 0 : index
      %c0_63 = arith.constant 0 : index
      %149 = vector.load %arg10[%c0_62, %c0_63] : memref<2x1xf32, #tpu.memory_space<vmem>>, vector<2x1xf32>
      tpu.vector_store %arg10[%c0_62, %c0_63], %148 {strides = array<i32>} : memref<2x1xf32, #tpu.memory_space<vmem>>, vector<2x1xf32>,
    } else {
    }
    return
  }
  func.func @transform_0(%arg0: i32) -> (i32, i32, i32) {
    %c0_i32 = arith.constant 0 : i32
    %c0_i32_0 = arith.constant 0 : i32
    %c0_i32_1 = arith.constant 0 : i32
    return %c0_i32, %c0_i32_0, %arg0 : i32, i32, i32
  }
  func.func @transform_1(%arg0: i32) -> i32 {
    %c0_i32 = arith.constant 0 : i32
    %c0_i32_0 = arith.constant 0 : i32
    return %c0_i32 : i32
  }
  func.func @transform_2(%arg0: i32) -> i32 {
    %c0_i32 = arith.constant 0 : i32
    %c0_i32_0 = arith.constant 0 : i32
    return %c0_i32 : i32
  }
  func.func @transform_3(%arg0: i32) -> i32 {
    %c0_i32 = arith.constant 0 : i32
    %c0_i32_0 = arith.constant 0 : i32
    return %c0_i32 : i32
  }
  func.func @transform_4(%arg0: i32) -> i32 {
    %c0_i32 = arith.constant 0 : i32
    %c0_i32_0 = arith.constant 0 : i32
    return %c0_i32 : i32
  }
  func.func @transform_5(%arg0: i32) -> (i32, i32, i32) {
    %c0_i32 = arith.constant 0 : i32
    %c0_i32_0 = arith.constant 0 : i32
    %c0_i32_1 = arith.constant 0 : i32
    return %c0_i32, %c0_i32_0, %arg0 : i32, i32, i32
  }
  func.func @transform_6(%arg0: i32) -> (i32, i32) {
    %c0_i32 = arith.constant 0 : i32
    %c0_i32_0 = arith.constant 0 : i32
    %c0_i32_1 = arith.constant 0 : i32
    return %c0_i32, %c0_i32_0 : i32, i32
  }
  func.func @transform_7(%arg0: i32) -> (i32, i32) {
    %c0_i32 = arith.constant 0 : i32
    %c0_i32_0 = arith.constant 0 : i32
    %c0_i32_1 = arith.constant 0 : i32
    return %c0_i32, %c0_i32_0 : i32, i32
  }
  func.func @transform_8(%arg0: i32) -> (i32, i32) {
    %c0_i32 = arith.constant 0 : i32
    %c0_i32_0 = arith.constant 0 : i32
    %c0_i32_1 = arith.constant 0 : i32
    return %c0_i32, %c0_i32_0 : i32, i32
  }
  func.func @transform_9(%arg0: i32) -> (i32, i32) {
    %c0_i32 = arith.constant 0 : i32
    %c0_i32_0 = arith.constant 0 : i32
    %c0_i32_1 = arith.constant 0 : i32
    return %c0_i32, %c0_i32_0 : i32, i32
  }
}

</mosaic_0001>

<llo_original>
// kernel: tpu_custom_call.1
$region0: #{tpu_custom_call.1}
  #allocation0 [shape = 'u32[]', space=smem, size = 0x4, offset = 0x4, fixed_abs, tag = 'smem constant byte address 0x4 - core index']
  #allocation1 [shape = 'u32[144,128]{1,0:T(1,128)}', space=vmem, size = 0x12000, scoped, tag = 'internal scratch']
  #allocation2 [shape = 'f32[2,3]{1,0:T(2,128)}', space=vmem, size = 0x400, scoped, tag = 'scratch operand']
  #allocation3 [shape = 'f32[2,3]{1,0:T(2,128)}', space=vmem, size = 0x400, scoped, tag = 'scratch operand']
  #allocation4 [shape = 'f32[1]{0:T(128)S(6)}', space=smem, size = 0x200, scoped, tag = 'scoped memory for tpu_custom_call.1']
  %s0 = inlined_call_operand.vmem [shape: f32[2,3,256], index: 0, kind: input, shape index: {}]
  %s1 = inlined_call_operand.vmem [shape: f32[9], index: 1, kind: input, shape index: {}]
  %s2 = inlined_call_operand.vmem [shape: f32[3], index: 2, kind: input, shape index: {}]
  %s3 = inlined_call_operand.vmem [shape: f32[3], index: 3, kind: input, shape index: {}]
  %s4 = inlined_call_operand.<no memory space> [shape: f32[1], index: 4, kind: input, shape index: {}]
  %s5 = inlined_call_operand.vmem [shape: f32[2,3,256], index: 5, kind: output, shape index: {0}]
  %s6 = inlined_call_operand.hbm [shape: f32[1,3], index: 6, kind: output, shape index: {1}]
  %s7 = inlined_call_operand.hbm [shape: f32[1,3], index: 7, kind: output, shape index: {2}]
  %s8 = inlined_call_operand.hbm [shape: f32[2,3], index: 8, kind: output, shape index: {3}]
  %s9 = inlined_call_operand.vmem [shape: f32[2,1], index: 9, kind: output, shape index: {4}]
  %10 = xla_tuple %s5, %s6, %s7, %s8, %s9
  %s11 = sld [smem:[#allocation0]]
  $region82: #{tpu_custom_call.1} parent=0
    _
  %s13 = ssub.s32 1, %s11
  %s14 = scalar_select 0, %s13, %s11
  %15 = sst [smem:[#allocation4]] %s4
  $region1: #{tpu_custom_call.1} parent=0
    #allocation5 [shape = 'u8[512]{0}', space=smem, size = 0x200, scoped, tag = 'input window, operand 1, single buffered']
    #allocation6 [shape = 's32[1]{0}', space=sflag, size = 0x4, scoped, tag = 'scoped memory for tpu_custom_call.1']
    #allocation7 [shape = 's32[1]{0}', space=sflag, size = 0x4, scoped, tag = 'scoped memory for tpu_custom_call.1']
    #allocation8 [shape = 'u8[512]{0}', space=smem, size = 0x200, scoped, tag = 'input window, operand 2, single buffered']
    #allocation9 [shape = 's32[1]{0}', space=sflag, size = 0x4, scoped, tag = 'scoped memory for tpu_custom_call.1']
    #allocation10 [shape = 'u8[512]{0}', space=smem, size = 0x200, scoped, tag = 'input window, operand 3, single buffered']
    #allocation11 [shape = 'u8[512]{0}', space=vmem, size = 0x400, scoped, tag = 'output window, operand 1, single buffered']
    #allocation12 [shape = 'u8[512]{0}', space=vmem, size = 0x400, scoped, tag = 'output window, operand 2, single buffered']
    #allocation13 [shape = 's32[1]{0}', space=sflag, size = 0x4, scoped, tag = 'scoped memory for tpu_custom_call.1']
    #allocation14 [shape = 'u8[1024]{0}', space=vmem, size = 0x400, scoped, tag = 'output window, operand 3, single buffered']
    %16 = vsyncpa [#allocation7], 0
    %17 = vsyncpa [#allocation9], 0
    %18 = vsyncpa [#allocation6], 0
    %19 = vsyncpa [#allocation13], 0
    // Predicated region
    $region2: #{tpu_custom_call.1} parent=1 // pred_check
      _
    $region3: #{tpu_custom_call.1} parent=1 // pred_check_branch
      %21 = sbr.rel (0) target = $region5
    $region4: #{tpu_custom_call.1} parent=1 // pred_region
      _
    $region5: #{tpu_custom_call.1} parent=1 // pred_fallthru
      _
    // Predicated region
    $region6: #{tpu_custom_call.1} parent=1 // pred_check
      _
    $region7: #{tpu_custom_call.1} parent=1 // pred_check_branch
      %23 = sbr.rel (0) target = $region9
    $region8: #{tpu_custom_call.1} parent=1 // pred_region
      %s25 = ssub.s32 16, 16
      %26 = vsyncadd [#allocation7], %s25
      %s28 = sshll.u32 %s1, 4
      %s29 = int_to_ptr.vmem [resolvable:$true] %s28
      %31 = dma.vmem_to_smem %s29, 16, [#allocation5], [#allocation7]
    $region9: #{tpu_custom_call.1} parent=1 // pred_fallthru
      _
    // Predicated region
    $region10: #{tpu_custom_call.1} parent=1 // pred_check
      _
    $region11: #{tpu_custom_call.1} parent=1 // pred_check_branch
      %33 = sbr.rel (0) target = $region13
    $region12: #{tpu_custom_call.1} parent=1 // pred_region
      %s35 = ssub.s32 16, 16
      %36 = vsyncadd [#allocation9], %s35
      %s38 = sshll.u32 %s2, 4
      %s39 = int_to_ptr.vmem [resolvable:$true] %s38
      %41 = dma.vmem_to_smem %s39, 16, [#allocation8], [#allocation9]
    $region13: #{tpu_custom_call.1} parent=1 // pred_fallthru
      _
    // Predicated region
    $region14: #{tpu_custom_call.1} parent=1 // pred_check
      _
    $region15: #{tpu_custom_call.1} parent=1 // pred_check_branch
      %43 = sbr.rel (0) target = $region17
    $region16: #{tpu_custom_call.1} parent=1 // pred_region
      %s45 = ssub.s32 16, 16
      %46 = vsyncadd [#allocation9], %s45
      %s48 = sshll.u32 %s3, 4
      %s49 = int_to_ptr.vmem [resolvable:$true] %s48
      %51 = dma.vmem_to_smem %s49, 16, [#allocation10], [#allocation9]
    $region17: #{tpu_custom_call.1} parent=1 // pred_fallthru
      _
    // Predicated region
    $region18: #{tpu_custom_call.1} parent=1 // pred_check
      _
    $region19: #{tpu_custom_call.1} parent=1 // pred_check_branch
      %53 = sbr.rel (0) target = $region21
    $region20: #{tpu_custom_call.1} parent=1 // pred_region
      _
    $region21: #{tpu_custom_call.1} parent=1 // pred_fallthru
      _
    // Predicated region
    $region22: #{tpu_custom_call.1} parent=1 // pred_check
      _
    $region23: #{tpu_custom_call.1} parent=1 // pred_check_branch
      %55 = sbr.rel (0) target = $region25
    $region24: #{tpu_custom_call.1} parent=1 // pred_region
      %56 = dma.done [#allocation7], 16
    $region25: #{tpu_custom_call.1} parent=1 // pred_fallthru
      _
    // Predicated region
    $region26: #{tpu_custom_call.1} parent=1 // pred_check
      _
    $region27: #{tpu_custom_call.1} parent=1 // pred_check_branch
      %58 = sbr.rel (0) target = $region29
    $region28: #{tpu_custom_call.1} parent=1 // pred_region
      %59 = dma.done [#allocation9], 16
    $region29: #{tpu_custom_call.1} parent=1 // pred_fallthru
      _
    // Predicated region
    $region30: #{tpu_custom_call.1} parent=1 // pred_check
      _
    $region31: #{tpu_custom_call.1} parent=1 // pred_check_branch
      %61 = sbr.rel (0) target = $region33
    $region32: #{tpu_custom_call.1} parent=1 // pred_region
      %62 = dma.done [#allocation9], 16
    $region33: #{tpu_custom_call.1} parent=1 // pred_fallthru
      _
    %63 = sfence
    %p64 = scmp.eq.s32.totalorder 0, 0
    // Predicated region
    $region34: #{tpu_custom_call.1} parent=1 // pred_check
      %p65 = pneg %p64
    $region35: #{tpu_custom_call.1} parent=1 // pred_check_branch
      %67 = sbr.rel (%p65) target = $region37
    $region36: #{tpu_custom_call.1} parent=1 // pred_region
      %vm68 = vcmask 17408
      %69 = vst.msk [vmem:[#allocation2] sm:$0x3] %vm68, 0.0
      %70 = vst.msk [vmem:[#allocation3] sm:$0x3] %vm68, 0.0
    $region37: #{tpu_custom_call.1} parent=1 // pred_fallthru
      _
    %v71 = vld [vmem:[%s0] sm:$0x77]
    %v72 = vld [vmem:[%s0 + $0x8] sm:$0x77]
    %s73 = sld [smem:[#allocation5]]
    %v74 = vstv %s73
    %v75 = vmul.f32 %v71, %v74
    %v76 = vmul.f32 %v72, %v74
    %s77 = sld [smem:[#allocation5 + $0x1]]
    %v78 = vstv %s77
    %v79 = vmul.f32 %v71, %v78
    %v80 = vmul.f32 %v72, %v78
    %v83 = vrot.slane %v79, 5
    %v84 = vrot.slane %v83, 4
    %v85 = vrot.slane %v80, 5
    %v86 = vrot.slane %v85, 4
    %v89 = vadd.f32 %v75, %v84
    %v90 = vadd.f32 %v76, %v86
    %s91 = sld [smem:[#allocation5 + $0x2]]
    %v92 = vstv %s91
    %v93 = vmul.f32 %v71, %v92
    %v94 = vmul.f32 %v72, %v92
    %v97 = vrot.slane %v93, 6
    %v98 = vrot.slane %v97, 4
    %v99 = vrot.slane %v94, 6
    %v100 = vrot.slane %v99, 4
    %v103 = vadd.f32 %v89, %v98
    %v104 = vadd.f32 %v90, %v100
    %s105 = sld [smem:[#allocation8]]
    %v106 = vstv %s105
    %v107 = vadd.f32 %v103, %v106
    %v108 = vadd.f32 %v104, %v106
    %v109 = vmax.f32 %v107, 0.0
    %v110 = vmax.f32 %v108, 0.0
    %v114 = vunpack.c.l.s4 1966171168
    %v115 = vunpack.c.0.s8 %v114
    %v116 = vlaneseq
    %v117 = vshrl.u32 %v116, 7
    %v118 = vsub.s32 %v115, %v117
    %v119 = vrot.slane %v109, %v118
    %v121 = vunpack.c.l.s4 1966171168
    %v122 = vunpack.c.0.s8 %v121
    %v123 = vlaneseq
    %v124 = vshrl.u32 %v123, 7
    %v125 = vsub.s32 %v122, %v124
    %v126 = vrot.slane %v119, %v125
    %v128 = vunpack.c.l.s4 1966171168
    %v129 = vunpack.c.0.s8 %v128
    %v130 = vlaneseq
    %v131 = vshrl.u32 %v130, 7
    %v132 = vsub.s32 %v129, %v131
    %v133 = vrot.slane %v110, %v132
    %v135 = vunpack.c.l.s4 1966171168
    %v136 = vunpack.c.0.s8 %v135
    %v137 = vlaneseq
    %v138 = vshrl.u32 %v137, 7
    %v139 = vsub.s32 %v136, %v138
    %v140 = vrot.slane %v133, %v139
    %v143 = vlaneseq
    %vm144 = vcmp.ge.s32.totalorder %v143, 0
    %vm145 = vcmp.lt.s32.totalorder %v143, 256
    %vm146 = vmand %vm144, %vm145
    %147 = vst.msk [vmem:[%s5] ss:$4 sm:$0x3] %vm146, %v126
    %s148 = scalar_lea.vmem %s5, 8
    %149 = vst.msk [vmem:[%s148] ss:$4 sm:$0x3] %vm146, %v140
    %v150 = vlaneseq
    %v151 = vshrl.u32 %v150, 7
    %v152 = vsub.s32 0, %v151
    %v153 = vrot.slane %v109, %v152
    %v154 = vlaneseq
    %v155 = vshrl.u32 %v154, 7
    %v156 = vsub.s32 4, %v155
    %v157 = vrot.slane %v109, %v156
    %v158 = vlaneseq
    %v159 = vshrl.u32 %v158, 7
    %v160 = vsub.s32 0, %v159
    %v161 = vrot.slane %v110, %v160
    %v162 = vlaneseq
    %v163 = vshrl.u32 %v162, 7
    %v164 = vsub.s32 4, %v163
    %v165 = vrot.slane %v110, %v164
    %vm170 = vcmask 1040384
    %v171 = vsel %vm170, %v153, 0.0
    %v172 = vsel %vm170, %v157, 0.0
    %v173 = vadd.f32 %v171, %v172
    %174 = vadd.xlane.f32.xlu0 %v173
    %v175 = vpop.xlane.xlu0 %174
    %v176 = vsel %vm170, %v161, 0.0
    %v177 = vsel %vm170, %v165, 0.0
    %v178 = vadd.f32 %v176, %v177
    %179 = vadd.xlane.f32.xlu0 %v178
    %v180 = vpop.xlane.xlu0 %179
    %v181 = vmul.f32 %v109, %v109
    %v182 = vmul.f32 %v110, %v110
    %v185 = vlaneseq
    %v186 = vshrl.u32 %v185, 7
    %v187 = vsub.s32 0, %v186
    %v188 = vrot.slane %v181, %v187
    %v189 = vlaneseq
    %v190 = vshrl.u32 %v189, 7
    %v191 = vsub.s32 4, %v190
    %v192 = vrot.slane %v181, %v191
    %v193 = vlaneseq
    %v194 = vshrl.u32 %v193, 7
    %v195 = vsub.s32 0, %v194
    %v196 = vrot.slane %v182, %v195
    %v197 = vlaneseq
    %v198 = vshrl.u32 %v197, 7
    %v199 = vsub.s32 4, %v198
    %v200 = vrot.slane %v182, %v199
    %v205 = vsel %vm170, %v188, 0.0
    %v206 = vsel %vm170, %v192, 0.0
    %v207 = vadd.f32 %v205, %v206
    %208 = vadd.xlane.f32.xlu0 %v207
    %v209 = vpop.xlane.xlu0 %208
    %v210 = vsel %vm170, %v196, 0.0
    %v211 = vsel %vm170, %v200, 0.0
    %v212 = vadd.f32 %v210, %v211
    %213 = vadd.xlane.f32.xlu0 %v212
    %v214 = vpop.xlane.xlu0 %213
    %s215 = sld [smem:[#allocation5 + $0x3]]
    %v216 = vstv %s215
    %v217 = vmul.f32 %v71, %v216
    %v218 = vmul.f32 %v72, %v216
    %s219 = sld [smem:[#allocation5 + $0x4]]
    %v220 = vstv %s219
    %v221 = vmul.f32 %v71, %v220
    %v222 = vmul.f32 %v72, %v220
    %v225 = vrot.slane %v221, 5
    %v226 = vrot.slane %v225, 4
    %v227 = vrot.slane %v222, 5
    %v228 = vrot.slane %v227, 4
    %v231 = vadd.f32 %v217, %v226
    %v232 = vadd.f32 %v218, %v228
    %s233 = sld [smem:[#allocation5 + $0x5]]
    %v234 = vstv %s233
    %v235 = vmul.f32 %v71, %v234
    %v236 = vmul.f32 %v72, %v234
    %v239 = vrot.slane %v235, 6
    %v240 = vrot.slane %v239, 4
    %v241 = vrot.slane %v236, 6
    %v242 = vrot.slane %v241, 4
    %v245 = vadd.f32 %v231, %v240
    %v246 = vadd.f32 %v232, %v242
    %s247 = sld [smem:[#allocation8 + $0x1]]
    %v248 = vstv %s247
    %v249 = vadd.f32 %v245, %v248
    %v250 = vadd.f32 %v246, %v248
    %v251 = vmax.f32 %v249, 0.0
    %v252 = vmax.f32 %v250, 0.0
    %v256 = vunpack.c.l.s4 1966171168
    %v257 = vunpack.c.0.s8 %v256
    %v258 = vlaneseq
    %v259 = vshrl.u32 %v258, 7
    %v260 = vsub.s32 %v257, %v259
    %v261 = vrot.slane %v251, %v260
    %v263 = vunpack.c.l.s4 1966171168
    %v264 = vunpack.c.0.s8 %v263
    %v265 = vlaneseq
    %v266 = vshrl.u32 %v265, 7
    %v267 = vsub.s32 %v264, %v266
    %v268 = vrot.slane %v261, %v267
    %v270 = vunpack.c.l.s4 1966171168
    %v271 = vunpack.c.0.s8 %v270
    %v272 = vlaneseq
    %v273 = vshrl.u32 %v272, 7
    %v274 = vsub.s32 %v271, %v273
    %v275 = vrot.slane %v252, %v274
    %v277 = vunpack.c.l.s4 1966171168
    %v278 = vunpack.c.0.s8 %v277
    %v279 = vlaneseq
    %v280 = vshrl.u32 %v279, 7
    %v281 = vsub.s32 %v278, %v280
    %v282 = vrot.slane %v275, %v281
    %s285 = scalar_lea.vmem %s5, 1
    %286 = vst.msk [vmem:[%s285] ss:$4 sm:$0x3] %vm146, %v268
    %s287 = scalar_lea.vmem %s5, 9
    %288 = vst.msk [vmem:[%s287] ss:$4 sm:$0x3] %vm146, %v282
    %v289 = vlaneseq
    %v290 = vshrl.u32 %v289, 7
    %v291 = vsub.s32 0, %v290
    %v292 = vrot.slane %v251, %v291
    %v293 = vlaneseq
    %v294 = vshrl.u32 %v293, 7
    %v295 = vsub.s32 4, %v294
    %v296 = vrot.slane %v251, %v295
    %v297 = vlaneseq
    %v298 = vshrl.u32 %v297, 7
    %v299 = vsub.s32 0, %v298
    %v300 = vrot.slane %v252, %v299
    %v301 = vlaneseq
    %v302 = vshrl.u32 %v301, 7
    %v303 = vsub.s32 4, %v302
    %v304 = vrot.slane %v252, %v303
    %v309 = vsel %vm170, %v292, 0.0
    %v310 = vsel %vm170, %v296, 0.0
    %v311 = vadd.f32 %v309, %v310
    %312 = vadd.xlane.f32.xlu0 %v311
    %v313 = vpop.xlane.xlu0 %312
    %v314 = vsel %vm170, %v300, 0.0
    %v315 = vsel %vm170, %v304, 0.0
    %v316 = vadd.f32 %v314, %v315
    %317 = vadd.xlane.f32.xlu0 %v316
    %v318 = vpop.xlane.xlu0 %317
    %v319 = vmul.f32 %v251, %v251
    %v320 = vmul.f32 %v252, %v252
    %v323 = vlaneseq
    %v324 = vshrl.u32 %v323, 7
    %v325 = vsub.s32 0, %v324
    %v326 = vrot.slane %v319, %v325
    %v327 = vlaneseq
    %v328 = vshrl.u32 %v327, 7
    %v329 = vsub.s32 4, %v328
    %v330 = vrot.slane %v319, %v329
    %v331 = vlaneseq
    %v332 = vshrl.u32 %v331, 7
    %v333 = vsub.s32 0, %v332
    %v334 = vrot.slane %v320, %v333
    %v335 = vlaneseq
    %v336 = vshrl.u32 %v335, 7
    %v337 = vsub.s32 4, %v336
    %v338 = vrot.slane %v320, %v337
    %v343 = vsel %vm170, %v326, 0.0
    %v344 = vsel %vm170, %v330, 0.0
    %v345 = vadd.f32 %v343, %v344
    %346 = vadd.xlane.f32.xlu0 %v345
    %v347 = vpop.xlane.xlu0 %346
    %v348 = vsel %vm170, %v334, 0.0
    %v349 = vsel %vm170, %v338, 0.0
    %v350 = vadd.f32 %v348, %v349
    %351 = vadd.xlane.f32.xlu0 %v350
    %v352 = vpop.xlane.xlu0 %351
    %s353 = sld [smem:[#allocation5 + $0x6]]
    %v354 = vstv %s353
    %v355 = vmul.f32 %v71, %v354
    %v356 = vmul.f32 %v72, %v354
    %s357 = sld [smem:[#allocation5 + $0x7]]
    %v358 = vstv %s357
    %v359 = vmul.f32 %v71, %v358
    %v360 = vmul.f32 %v72, %v358
    %v363 = vrot.slane %v359, 5
    %v364 = vrot.slane %v363, 4
    %v365 = vrot.slane %v360, 5
    %v366 = vrot.slane %v365, 4
    %v369 = vadd.f32 %v355, %v364
    %v370 = vadd.f32 %v356, %v366
    %s371 = sld [smem:[#allocation5 + $0x8]]
    %v372 = vstv %s371
    %v373 = vmul.f32 %v71, %v372
    %v374 = vmul.f32 %v72, %v372
    %v377 = vrot.slane %v373, 6
    %v378 = vrot.slane %v377, 4
    %v379 = vrot.slane %v374, 6
    %v380 = vrot.slane %v379, 4
    %v383 = vadd.f32 %v369, %v378
    %v384 = vadd.f32 %v370, %v380
    %s385 = sld [smem:[#allocation8 + $0x2]]
    %v386 = vstv %s385
    %v387 = vadd.f32 %v383, %v386
    %v388 = vadd.f32 %v384, %v386
    %v389 = vmax.f32 %v387, 0.0
    %v390 = vmax.f32 %v388, 0.0
    %v394 = vunpack.c.l.s4 1966171168
    %v395 = vunpack.c.0.s8 %v394
    %v396 = vlaneseq
    %v397 = vshrl.u32 %v396, 7
    %v398 = vsub.s32 %v395, %v397
    %v399 = vrot.slane %v389, %v398
    %v401 = vunpack.c.l.s4 1966171168
    %v402 = vunpack.c.0.s8 %v401
    %v403 = vlaneseq
    %v404 = vshrl.u32 %v403, 7
    %v405 = vsub.s32 %v402, %v404
    %v406 = vrot.slane %v399, %v405
    %v408 = vunpack.c.l.s4 1966171168
    %v409 = vunpack.c.0.s8 %v408
    %v410 = vlaneseq
    %v411 = vshrl.u32 %v410, 7
    %v412 = vsub.s32 %v409, %v411
    %v413 = vrot.slane %v390, %v412
    %v415 = vunpack.c.l.s4 1966171168
    %v416 = vunpack.c.0.s8 %v415
    %v417 = vlaneseq
    %v418 = vshrl.u32 %v417, 7
    %v419 = vsub.s32 %v416, %v418
    %v420 = vrot.slane %v413, %v419
    %s423 = scalar_lea.vmem %s5, 2
    %424 = vst.msk [vmem:[%s423] ss:$4 sm:$0x3] %vm146, %v406
    %s425 = scalar_lea.vmem %s5, 10
    %426 = vst.msk [vmem:[%s425] ss:$4 sm:$0x3] %vm146, %v420
    %v427 = vlaneseq
    %v428 = vshrl.u32 %v427, 7
    %v429 = vsub.s32 0, %v428
    %v430 = vrot.slane %v389, %v429
    %v431 = vlaneseq
    %v432 = vshrl.u32 %v431, 7
    %v433 = vsub.s32 4, %v432
    %v434 = vrot.slane %v389, %v433
    %v435 = vlaneseq
    %v436 = vshrl.u32 %v435, 7
    %v437 = vsub.s32 0, %v436
    %v438 = vrot.slane %v390, %v437
    %v439 = vlaneseq
    %v440 = vshrl.u32 %v439, 7
    %v441 = vsub.s32 4, %v440
    %v442 = vrot.slane %v390, %v441
    %v447 = vsel %vm170, %v430, 0.0
    %v448 = vsel %vm170, %v434, 0.0
    %v449 = vadd.f32 %v447, %v448
    %450 = vadd.xlane.f32.xlu0 %v449
    %v451 = vpop.xlane.xlu0 %450
    %v452 = vsel %vm170, %v438, 0.0
    %v453 = vsel %vm170, %v442, 0.0
    %v454 = vadd.f32 %v452, %v453
    %455 = vadd.xlane.f32.xlu0 %v454
    %v456 = vpop.xlane.xlu0 %455
    %v457 = vmul.f32 %v389, %v389
    %v458 = vmul.f32 %v390, %v390
    %v461 = vlaneseq
    %v462 = vshrl.u32 %v461, 7
    %v463 = vsub.s32 0, %v462
    %v464 = vrot.slane %v457, %v463
    %v465 = vlaneseq
    %v466 = vshrl.u32 %v465, 7
    %v467 = vsub.s32 4, %v466
    %v468 = vrot.slane %v457, %v467
    %v469 = vlaneseq
    %v470 = vshrl.u32 %v469, 7
    %v471 = vsub.s32 0, %v470
    %v472 = vrot.slane %v458, %v471
    %v473 = vlaneseq
    %v474 = vshrl.u32 %v473, 7
    %v475 = vsub.s32 4, %v474
    %v476 = vrot.slane %v458, %v475
    %v481 = vsel %vm170, %v464, 0.0
    %v482 = vsel %vm170, %v468, 0.0
    %v483 = vadd.f32 %v481, %v482
    %484 = vadd.xlane.f32.xlu0 %v483
    %v485 = vpop.xlane.xlu0 %484
    %v486 = vsel %vm170, %v472, 0.0
    %v487 = vsel %vm170, %v476, 0.0
    %v488 = vadd.f32 %v486, %v487
    %489 = vadd.xlane.f32.xlu0 %v488
    %v490 = vpop.xlane.xlu0 %489
    %v491 = vld [vmem:[#allocation2] sm:$0x3]
    %v494 = vrot.slane %v180, 7
    %vm495 = vcmask 1041409
    %v496 = vsel %vm495, %v494, %v175
    %v500 = vrot.slane %v318, 7
    %v501 = vsel %vm495, %v500, %v313
    %v505 = vrot.slane %v456, 7
    %v506 = vsel %vm495, %v505, %v451
    %vm508 = vcmask 7168
    %v509 = vsel %vm508, %v496, %v501
    %vm510 = vcmask 15360
    %v511 = vsel %vm510, %v509, %v506
    %v512 = vadd.f32 %v491, %v511
    %vm513 = vcmask 17408
    %514 = vst.msk [vmem:[#allocation2] sm:$0x3] %vm513, %v512
    %v515 = vld [vmem:[#allocation3] sm:$0x3]
    %v518 = vrot.slane %v214, 7
    %v519 = vsel %vm495, %v518, %v209
    %v523 = vrot.slane %v352, 7
    %v524 = vsel %vm495, %v523, %v347
    %v528 = vrot.slane %v490, 7
    %v529 = vsel %vm495, %v528, %v485
    %v531 = vsel %vm508, %v519, %v524
    %v532 = vsel %vm510, %v531, %v529
    %v533 = vadd.f32 %v515, %v532
    %534 = vst.msk [vmem:[#allocation3] sm:$0x3] %vm513, %v533
    // Predicated region
    $region38: #{tpu_custom_call.1} parent=1 // pred_check
      %p535 = pneg %p64
    $region39: #{tpu_custom_call.1} parent=1 // pred_check_branch
      %537 = sbr.rel (%p535) target = $region41
    $region40: #{tpu_custom_call.1} parent=1 // pred_region
      %v538 = vld [vmem:[#allocation2] sm:$0x3]
      %v539 = vld [vmem:[#allocation3] sm:$0x3]
      %v540 = vsel %vm513, %v538, 0.0
      %v541 = vrot.slane %v540, 4
      %v542 = vadd.f32 %v540, %v541
      %v543 = vrot.slane %v542, 2
      %v544 = vadd.f32 %v542, %v543
      %v545 = vrot.slane %v544, 1
      %v546 = vadd.f32 %v544, %v545
      %v547 = vmul.f32 %v546, 0.001953125
      %v548 = vsel %vm513, %v539, 0.0
      %v549 = vrot.slane %v548, 4
      %v550 = vadd.f32 %v548, %v549
      %v551 = vrot.slane %v550, 2
      %v552 = vadd.f32 %v550, %v551
      %v553 = vrot.slane %v552, 1
      %v554 = vadd.f32 %v552, %v553
      %v555 = vmul.f32 %v554, 0.001953125
      %v556 = vmul.f32 %v547, %v547
      %v557 = vsub.f32 %v555, %v556
      %v558 = vmax.f32 %v557, 0.0
      %v559 = vadd.f32 %v558, 1e-05
      %v560 = vrsqrt.pop %v559
      %vm561 = vcmask 16384
      %562 = vst.msk [vmem:[#allocation11] sm:$0x1] %vm561, %v547
      %563 = vst.msk [vmem:[#allocation12] sm:$0x1] %vm561, %v560
      %v564 = vmul.f32 %v538, 0.00390625
      %v565 = vsub.f32 %v564, %v547
      %v566 = vmul.f32 %v565, %v560
      %567 = vst.msk [vmem:[#allocation14] sm:$0x3] %vm513, %v566
      %s568 = sld [smem:[#allocation10]]
      %v569 = vstv %s568
      %v570 = vmul.f32 %v566, %v569
      %s571 = sld [smem:[#allocation10 + $0x1]]
      %v572 = vstv %s571
      %v573 = vmul.f32 %v566, %v572
      %575 = vrot.lane.b32.xlu0 %v573, 127
      %v576 = vpop.permute.xlu0 %575
      %v578 = vadd.f32 %v570, %v576
      %s579 = sld [smem:[#allocation10 + $0x2]]
      %v580 = vstv %s579
      %v581 = vmul.f32 %v566, %v580
      %583 = vrot.lane.b32.xlu0 %v581, 126
      %v584 = vpop.permute.xlu0 %583
      %v586 = vadd.f32 %v578, %v584
      %s587 = sld [smem:[#allocation4]]
      %v588 = vstv %s587
      %v589 = vadd.f32 %v586, %v588
      %v590 = vmax.f32 %v589, 0.0
      %vm591 = vcmask 1024
      %v592 = vsel %vm591, %v590, 0.0
      %v593 = vrot.slane %v592, 4
      %v594 = vadd.f32 %v592, %v593
      %v595 = vrot.slane %v594, 2
      %v596 = vadd.f32 %v594, %v595
      %v597 = vrot.slane %v596, 1
      %v598 = vadd.f32 %v596, %v597
      %v599 = vrcp.pop 2.0
      %v600 = vmul.f32 %v598, %v599
      %v601 = vmul.f32 %v590, %v590
      %v602 = vsel %vm591, %v601, 0.0
      %v603 = vrot.slane %v602, 4
      %v604 = vadd.f32 %v602, %v603
      %v605 = vrot.slane %v604, 2
      %v606 = vadd.f32 %v604, %v605
      %v607 = vrot.slane %v606, 1
      %v608 = vadd.f32 %v606, %v607
      %v609 = vmul.f32 %v608, %v599
      %v610 = vmul.f32 %v600, %v600
      %v611 = vsub.f32 %v609, %v610
      %v612 = vmax.f32 %v611, 0.0
      %v613 = vsub.f32 %v590, %v600
      %v614 = vadd.f32 %v612, 1e-05
      %v615 = vrsqrt.pop %v614
      %v616 = vmul.f32 %v613, %v615
      %617 = vst.msk [vmem:[%s9] sm:$0x3] %vm591, %v616
    $region41: #{tpu_custom_call.1} parent=1 // pred_fallthru
      _
    // Predicated region
    $region42: #{tpu_custom_call.1} parent=1 // pred_check
      _
    $region43: #{tpu_custom_call.1} parent=1 // pred_check_branch
      %619 = sbr.rel (0) target = $region45
    $region44: #{tpu_custom_call.1} parent=1 // pred_region
      _
    $region45: #{tpu_custom_call.1} parent=1 // pred_fallthru
      _
    // Predicated region
    $region46: #{tpu_custom_call.1} parent=1 // pred_check
      _
    $region47: #{tpu_custom_call.1} parent=1 // pred_check_branch
      %621 = sbr.rel (0) target = $region49
    $region48: #{tpu_custom_call.1} parent=1 // pred_region
      %s623 = ssub.s32 16, 16
      %624 = vsyncadd [#allocation6], %s623
      %s626 = sshll.u32 [#allocation11], 4
      %s627 = int_to_ptr.vmem [resolvable:$true] %s626
      %629 = dma.vmem_to_hbm [thread:$0]  %s627, 16, %s6, [#allocation6]
    $region49: #{tpu_custom_call.1} parent=1 // pred_fallthru
      _
    // Predicated region
    $region50: #{tpu_custom_call.1} parent=1 // pred_check
      _
    $region51: #{tpu_custom_call.1} parent=1 // pred_check_branch
      %631 = sbr.rel (0) target = $region53
    $region52: #{tpu_custom_call.1} parent=1 // pred_region
      %s633 = ssub.s32 16, 16
      %634 = vsyncadd [#allocation13], %s633
      %s636 = sshll.u32 [#allocation12], 4
      %s637 = int_to_ptr.vmem [resolvable:$true] %s636
      %639 = dma.vmem_to_hbm [thread:$0]  %s637, 16, %s7, [#allocation13]
    $region53: #{tpu_custom_call.1} parent=1 // pred_fallthru
      _
    // Predicated region
    $region54: #{tpu_custom_call.1} parent=1 // pred_check
      _
    $region55: #{tpu_custom_call.1} parent=1 // pred_check_branch
      %641 = sbr.rel (0) target = $region57
    $region56: #{tpu_custom_call.1} parent=1 // pred_region
      %s643 = ssub.s32 32, 32
      %644 = vsyncadd [#allocation13], %s643
      %s646 = sshll.u32 [#allocation14], 4
      %s647 = int_to_ptr.vmem [resolvable:$true] %s646
      %649 = dma.vmem_to_hbm [thread:$0]  %s647, 32, %s8, [#allocation13]
    $region57: #{tpu_custom_call.1} parent=1 // pred_fallthru
      _
    // Predicated region
    $region58: #{tpu_custom_call.1} parent=1 // pred_check
      _
    $region59: #{tpu_custom_call.1} parent=1 // pred_check_branch
      %651 = sbr.rel (0) target = $region61
    $region60: #{tpu_custom_call.1} parent=1 // pred_region
      _
    $region61: #{tpu_custom_call.1} parent=1 // pred_fallthru
      _
    // Predicated region
    $region62: #{tpu_custom_call.1} parent=1 // pred_check
      _
    $region63: #{tpu_custom_call.1} parent=1 // pred_check_branch
      %653 = sbr.rel (0) target = $region65
    $region64: #{tpu_custom_call.1} parent=1 // pred_region
      _
    $region65: #{tpu_custom_call.1} parent=1 // pred_fallthru
      _
    // Predicated region
    $region66: #{tpu_custom_call.1} parent=1 // pred_check
      _
    $region67: #{tpu_custom_call.1} parent=1 // pred_check_branch
      %655 = sbr.rel (0) target = $region69
    $region68: #{tpu_custom_call.1} parent=1 // pred_region
      %656 = dma.done [#allocation6], 16
    $region69: #{tpu_custom_call.1} parent=1 // pred_fallthru
      _
    // Predicated region
    $region70: #{tpu_custom_call.1} parent=1 // pred_check
      _
    $region71: #{tpu_custom_call.1} parent=1 // pred_check_branch
      %658 = sbr.rel (0) target = $region73
    $region72: #{tpu_custom_call.1} parent=1 // pred_region
      %659 = dma.done [#allocation13], 16
    $region73: #{tpu_custom_call.1} parent=1 // pred_fallthru
      _
    // Predicated region
    $region74: #{tpu_custom_call.1} parent=1 // pred_check
      _
    $region75: #{tpu_custom_call.1} parent=1 // pred_check_branch
      %661 = sbr.rel (0) target = $region77
    $region76: #{tpu_custom_call.1} parent=1 // pred_region
      %662 = dma.done [#allocation13], 32
    $region77: #{tpu_custom_call.1} parent=1 // pred_fallthru
      _
    // Predicated region
    $region78: #{tpu_custom_call.1} parent=1 // pred_check
      _
    $region79: #{tpu_custom_call.1} parent=1 // pred_check_branch
      %664 = sbr.rel (0) target = $region81
    $region80: #{tpu_custom_call.1} parent=1 // pred_region
      _
    $region81: #{tpu_custom_call.1} parent=1 // pred_fallthru
      _
    %665 = vsyncpa [#allocation6], 1
    %666 = vsyncpa [#allocation13], 1
    %667 = vsyncpa [#allocation7], 1
    %668 = vsyncpa [#allocation9], 1

</llo_original>
